<compile_context>
chip_gen: v6e
topology: v6e:2x2x1
jax: 0.10.0
libtpu: 0.0.40
codegen_flags: <defaults>
</compile_context>

<pallas_src>
from functools import partial

import numpy as np
import jax
import jax.numpy as jnp
from jax.experimental import pallas as pl
from jax.experimental.pallas import tpu as pltpu

_LANES = 128
_CLIP_VALUE_DEFAULT = 4.135166556742356


# --------------------------------------------------------------------------
# Anchor generation (Detectron-style), deterministic, numpy glue.
# --------------------------------------------------------------------------
def _whctrs(anchor):
    w = anchor[2] - anchor[0] + 1
    h = anchor[3] - anchor[1] + 1
    x_ctr = anchor[0] + 0.5 * (w - 1)
    y_ctr = anchor[1] + 0.5 * (h - 1)
    return w, h, x_ctr, y_ctr


def _mkanchors(ws, hs, x_ctr, y_ctr):
    ws = ws[:, np.newaxis]
    hs = hs[:, np.newaxis]
    return np.hstack((x_ctr - 0.5 * (ws - 1),
                      y_ctr - 0.5 * (hs - 1),
                      x_ctr + 0.5 * (ws - 1),
                      y_ctr + 0.5 * (hs - 1)))


def _ratio_enum(anchor, ratios):
    w, h, x_ctr, y_ctr = _whctrs(anchor)
    size = w * h
    size_ratios = size / ratios
    ws = np.round(np.sqrt(size_ratios))
    hs = np.round(ws * ratios)
    return _mkanchors(ws, hs, x_ctr, y_ctr)


def _scale_enum(anchor, scales):
    w, h, x_ctr, y_ctr = _whctrs(anchor)
    ws = w * scales
    hs = h * scales
    return _mkanchors(ws, hs, x_ctr, y_ctr)


def generate_anchors(stride=16.0, sizes=(32, 64, 128, 256, 512),
                     aspect_ratios=(0.5, 1.0, 2.0)):
    scales = np.array(sizes, dtype=np.float64) / stride
    ratios = np.array(aspect_ratios, dtype=np.float64)
    anchor = np.array([1, 1, stride, stride], dtype=np.float64) - 1
    anchors = _ratio_enum(anchor, ratios)
    anchors = np.vstack([_scale_enum(anchors[i, :], scales)
                         for i in range(anchors.shape[0])])
    return anchors.astype(np.float32)


def get_all_anchors(anchors, feat_stride, feature_height, feature_width):
    shift_x = np.arange(0, feature_width) * feat_stride
    shift_y = np.arange(0, feature_height) * feat_stride
    shift_x, shift_y = np.meshgrid(shift_x, shift_y, copy=False)
    shifts = np.vstack((shift_x.ravel(), shift_y.ravel(),
                        shift_x.ravel(), shift_y.ravel())).transpose()
    all_anchors = anchors[np.newaxis, :, :] + shifts[:, np.newaxis, :]
    return all_anchors.reshape((-1, 4)).astype(np.float32)


# --------------------------------------------------------------------------
# Tile planning.  Boxes are viewed as (rows, 128); a block is (tr, 128) rows
# with tr a multiple of 8 (full (8,128) vreg tiles).  Aim for >= 2 grid
# steps when possible (v7x megacore) while keeping blocks large.
# --------------------------------------------------------------------------
def _tile_plan(n):
    """Return (tile_rows, padded_rows)."""
    nr = -(-n // _LANES)                       # ceil(n / 128) rows of boxes
    TR_MAX = 512                               # 512*128 = 64K boxes per step
    half = -(-nr // 2)
    tr = min(TR_MAX, max(8, ((half + 7) // 8) * 8))
    nr_pad = ((nr + tr - 1) // tr) * tr
    return tr, nr_pad


# --------------------------------------------------------------------------
# Pallas kernel: bbox_transform + clip_tiled_boxes + filter_boxes mask.
# Scalars are baked in as closure constants.
# --------------------------------------------------------------------------
def _make_decode_kernel(im_h, im_w, min_size, clip_value):
    im_h = float(im_h)
    im_w = float(im_w)
    min_size = float(min_size)
    clip_value = float(clip_value)

    def kernel(in_ref, out_ref):
        # in_ref: (8, tr, 128) f32 — fields 0-3 anchor x1,y1,x2,y2;
        #                              fields 4-7 deltas dx,dy,dw,dh.
        # Every field is a (tr, 128) slab -> full (8,128) vregs on the VPU.
        x1 = in_ref[0]
        y1 = in_ref[1]
        x2 = in_ref[2]
        y2 = in_ref[3]
        dx = in_ref[4]
        dy = in_ref[5]
        dw = jnp.minimum(in_ref[6], clip_value)
        dh = jnp.minimum(in_ref[7], clip_value)

        widths = x2 - x1 + 1.0
        heights = y2 - y1 + 1.0
        ctr_x = x1 + 0.5 * widths
        ctr_y = y1 + 0.5 * heights

        pred_ctr_x = dx * widths + ctr_x
        pred_ctr_y = dy * heights + ctr_y
        pred_w = jnp.exp(dw) * widths          # exp -> EUP (free slot)
        pred_h = jnp.exp(dh) * heights

        px1 = pred_ctr_x - 0.5 * pred_w
        py1 = pred_ctr_y - 0.5 * pred_h
        px2 = pred_ctr_x + 0.5 * pred_w - 1.0
        py2 = pred_ctr_y + 0.5 * pred_h - 1.0

        # clip_tiled_boxes (bounds are compile-time constants)
        px1 = jnp.maximum(jnp.minimum(px1, im_w - 1.0), 0.0)
        py1 = jnp.maximum(jnp.minimum(py1, im_h - 1.0), 0.0)
        px2 = jnp.maximum(jnp.minimum(px2, im_w - 1.0), 0.0)
        py2 = jnp.maximum(jnp.minimum(py2, im_h - 1.0), 0.0)

        # filter_boxes keep-mask
        ws = px2 - px1 + 1.0
        hs = py2 - py1 + 1.0
        xc = px1 + ws * 0.5
        yc = py1 + hs * 0.5
        keep = ((ws >= min_size) & (hs >= min_size)
                & (xc < im_w) & (yc < im_h)).astype(jnp.float32)

        # Output slab: (5, tr, 128) — fields 0-3 clipped box, field 4 keep.
        out_ref[0] = px1
        out_ref[1] = py1
        out_ref[2] = px2
        out_ref[3] = py2
        out_ref[4] = keep

    return kernel


# --------------------------------------------------------------------------
# Single jitted program: NCHW->flat reshapes, slab build, Pallas decode,
# un-pad.  One D2H transfer feeds the host-side sort/filter/NMS glue.
# --------------------------------------------------------------------------
@partial(jax.jit,
         static_argnames=("im_h", "im_w", "min_size_scaled", "clip_value"))
def _decode_all(all_anchors, rpn_bbox_pred, rpn_cls_probs, *, im_h, im_w,
                min_size_scaled, clip_value=_CLIP_VALUE_DEFAULT):
    # NCHW -> (H*W*A, 4) / (H*W*A,)  (same as squeeze(0).permute(1,2,0).view()).
    bbox_deltas = jnp.transpose(rpn_bbox_pred[0], (1, 2, 0)).reshape(-1, 4)
    scores = jnp.transpose(rpn_cls_probs[0], (1, 2, 0)).reshape(-1)

    N = all_anchors.shape[0]
    tr, nr_pad = _tile_plan(N)
    np_ = nr_pad * _LANES
    pad = np_ - N

    # Fused field-major input slab: (8, nr_pad, 128).
    slab = jnp.concatenate([all_anchors.astype(jnp.float32),
                            bbox_deltas.astype(jnp.float32)], axis=1)  # (N, 8)
    slab = jnp.pad(slab, ((0, pad), (0, 0))).T                         # (8, Np)
    slab = slab.reshape(8, nr_pad, _LANES)                             # (8, R, 128)

    kernel = _make_decode_kernel(im_h, im_w, min_size_scaled, clip_value)

    out = pl.pallas_call(
        kernel,
        out_shape=jax.ShapeDtypeStruct((5, nr_pad, _LANES), jnp.float32),
        grid_spec=pltpu.PrefetchScalarGridSpec(
            num_scalar_prefetch=0,
            grid=(nr_pad // tr,),
            in_specs=[pl.BlockSpec((8, tr, _LANES), lambda i: (0, i, 0))],
            out_specs=pl.BlockSpec((5, tr, _LANES), lambda i: (0, i, 0)),
        ),
        compiler_params=pltpu.CompilerParams(
            dimension_semantics=("parallel",)),
    )(slab)

    flat = out.reshape(5, np_)
    # Padded tail boxes (zero anchors/deltas) decode to 1x1 keep=1 boxes;
    # the :N slice discards them before any downstream use.
    proposals = flat[0:4, :N].T      # (N, 4)
    keep_mask = flat[4, :N]          # (N,)
    return proposals, keep_mask, scores


# --------------------------------------------------------------------------
# Greedy NMS (Detectron semantics, +1 areas) — host-side numpy glue.
# --------------------------------------------------------------------------
def nms_np(dets, thresh):
    # TODO(synk): greedy NMS is sequential/data-dependent; kept host-side (no clean Pallas equivalent).
    x1, y1, x2, y2, scores = dets[:, 0], dets[:, 1], dets[:, 2], dets[:, 3], dets[:, 4]
    areas = (x2 - x1 + 1) * (y2 - y1 + 1)
    order = scores.argsort()[::-1]
    keep = []
    while order.size > 0:
        i = order[0]
        keep.append(int(i))
        xx1 = np.maximum(x1[i], x1[order[1:]])
        yy1 = np.maximum(y1[i], y1[order[1:]])
        xx2 = np.minimum(x2[i], x2[order[1:]])
        yy2 = np.minimum(y2[i], y2[order[1:]])
        w = np.maximum(0.0, xx2 - xx1 + 1)
        h = np.maximum(0.0, yy2 - yy1 + 1)
        inter = w * h
        ovr = inter / (areas[i] + areas[order[1:]] - inter)
        inds = np.where(ovr <= thresh)[0]
        order = order[inds + 1]
    return keep


# --------------------------------------------------------------------------
# Full GenerateProposals.forward equivalent.
# --------------------------------------------------------------------------
def generate_proposals_forward(rpn_cls_probs, rpn_bbox_pred, im_height,
                               im_width, scaling_factor,
                               spatial_scale=0.0625, train=False,
                               rpn_pre_nms_top_n=None, rpn_post_nms_top_n=None,
                               rpn_nms_thresh=0.7, rpn_min_size=0):
    rpn_pre_nms_top_n = (rpn_pre_nms_top_n if rpn_pre_nms_top_n is not None
                         else (12000 if train else 6000))
    rpn_post_nms_top_n = (rpn_post_nms_top_n if rpn_post_nms_top_n is not None
                          else (2000 if train else 1000))

    anchors = generate_anchors(stride=1.0 / spatial_scale)
    feat_stride = 1.0 / spatial_scale
    _, _, H, W = rpn_cls_probs.shape
    all_anchors = get_all_anchors(anchors, feat_stride, H, W)  # (H*W*A, 4)

    # Hot path: bbox decode + clip + keep-mask for ALL anchors on device.
    # The decode is elementwise and order-invariant, so running it before the
    # score ordering is equivalent to the reference (which orders first).
    proposals_all, keep_mask_all, scores_dev = _decode_all(
        jnp.asarray(all_anchors), jnp.asarray(rpn_bbox_pred),
        jnp.asarray(rpn_cls_probs),
        im_h=float(im_height), im_w=float(im_width),
        min_size_scaled=float(rpn_min_size) * float(scaling_factor),
        clip_value=_CLIP_VALUE_DEFAULT)

    # Single D2H transfer feeding the host-side sort / filter / NMS glue.
    proposals_all, keep_mask_all, scores_np = map(
        np.asarray, jax.device_get((proposals_all, keep_mask_all, scores_dev)))
    scores_np = scores_np.astype(np.float32)

    # Score ordering (TODO(synk): argsort/argpartition stays host-side as in the reference).
    if rpn_pre_nms_top_n <= 0 or rpn_pre_nms_top_n >= len(scores_np):
        order = np.argsort(-scores_np)
    else:
        inds = np.argpartition(-scores_np, rpn_pre_nms_top_n)[:rpn_pre_nms_top_n]
        order = np.argsort(-scores_np[inds])
        order = inds[order]

    proposals = proposals_all[order, :]
    scores = scores_np[order, np.newaxis]
    keep_mask = keep_mask_all[order]

    keep = np.where(keep_mask > 0.5)[0]
    proposals = proposals[keep, :]
    scores = scores[keep, :]

    if rpn_nms_thresh > 0:
        keep = nms_np(np.hstack((proposals, scores)).astype(np.float32),
                      rpn_nms_thresh)
        if rpn_post_nms_top_n > 0:
            keep = keep[:rpn_post_nms_top_n]
        proposals = proposals[keep, :]
        scores = scores[keep, :]

    return jnp.asarray(proposals), jnp.asarray(scores)


# --------------------------------------------------------------------------
if __name__ == "__main__":
    key = jax.random.PRNGKey(0)
    k1, k2 = jax.random.split(key)

    A = 15          # anchors per location (5 sizes x 3 aspect ratios)
    H = W = 16      # feature-map spatial size
    spatial_scale = 0.0625
    im_height = im_width = float(H / spatial_scale)  # 256.0
    scaling_factor = 1.0

    rpn_cls_probs = jax.random.uniform(k1, (1, A, H, W), dtype=jnp.float32)
    rpn_bbox_pred = jax.random.normal(k2, (1, 4 * A, H, W), dtype=jnp.float32) * 0.1

    proposals, scores = generate_proposals_forward(
        rpn_cls_probs, rpn_bbox_pred, im_height, im_width, scaling_factor,
        spatial_scale=spatial_scale, train=False)

    jax.block_until_ready((proposals, scores))
    assert proposals.shape[1] == 4 and proposals.shape[0] == scores.shape[0]
    print("KERNEL_OK")
</pallas_src>

<mosaic_0001>
module attributes {stable_mosaic.version = 11 : i64} {
  func.func @kernel(%arg0: i32, %arg1: memref<8x16x128xf32, #tpu.memory_space<vmem>>, %arg2: memref<5x16x128xf32, #tpu.memory_space<vmem>>) attributes {dimension_semantics = [#tpu.dimension_semantics<parallel>], iteration_bounds = array<i64: 2>, scalar_prefetch = 0 : i64, scratch_operands = 0 : i64, tpu.core_type = #tpu.core_type<tc>, window_params = [{transform_indices = @transform_0, window_bounds = array<i64: 8, 16, 128>}, {transform_indices = @transform_1, window_bounds = array<i64: 5, 16, 128>}]} {
    %c0 = arith.constant 0 : index
    %c0_0 = arith.constant 0 : index
    %c0_1 = arith.constant 0 : index
    %0 = vector.load %arg1[%c0, %c0_0, %c0_1] : memref<8x16x128xf32, #tpu.memory_space<vmem>>, vector<1x16x128xf32>
    %1 = vector.shape_cast %0 : vector<1x16x128xf32> to vector<16x128xf32>
    %c1 = arith.constant 1 : index
    %c0_2 = arith.constant 0 : index
    %c0_3 = arith.constant 0 : index
    %2 = vector.load %arg1[%c1, %c0_2, %c0_3] : memref<8x16x128xf32, #tpu.memory_space<vmem>>, vector<1x16x128xf32>
    %3 = vector.shape_cast %2 : vector<1x16x128xf32> to vector<16x128xf32>
    %c2 = arith.constant 2 : index
    %c0_4 = arith.constant 0 : index
    %c0_5 = arith.constant 0 : index
    %4 = vector.load %arg1[%c2, %c0_4, %c0_5] : memref<8x16x128xf32, #tpu.memory_space<vmem>>, vector<1x16x128xf32>
    %5 = vector.shape_cast %4 : vector<1x16x128xf32> to vector<16x128xf32>
    %c3 = arith.constant 3 : index
    %c0_6 = arith.constant 0 : index
    %c0_7 = arith.constant 0 : index
    %6 = vector.load %arg1[%c3, %c0_6, %c0_7] : memref<8x16x128xf32, #tpu.memory_space<vmem>>, vector<1x16x128xf32>
    %7 = vector.shape_cast %6 : vector<1x16x128xf32> to vector<16x128xf32>
    %c4 = arith.constant 4 : index
    %c0_8 = arith.constant 0 : index
    %c0_9 = arith.constant 0 : index
    %8 = vector.load %arg1[%c4, %c0_8, %c0_9] : memref<8x16x128xf32, #tpu.memory_space<vmem>>, vector<1x16x128xf32>
    %9 = vector.shape_cast %8 : vector<1x16x128xf32> to vector<16x128xf32>
    %c5 = arith.constant 5 : index
    %c0_10 = arith.constant 0 : index
    %c0_11 = arith.constant 0 : index
    %10 = vector.load %arg1[%c5, %c0_10, %c0_11] : memref<8x16x128xf32, #tpu.memory_space<vmem>>, vector<1x16x128xf32>
    %11 = vector.shape_cast %10 : vector<1x16x128xf32> to vector<16x128xf32>
    %c6 = arith.constant 6 : index
    %c0_12 = arith.constant 0 : index
    %c0_13 = arith.constant 0 : index
    %12 = vector.load %arg1[%c6, %c0_12, %c0_13] : memref<8x16x128xf32, #tpu.memory_space<vmem>>, vector<1x16x128xf32>
    %13 = vector.shape_cast %12 : vector<1x16x128xf32> to vector<16x128xf32>
    %cst = arith.constant 4.13516665 : f32
    %14 = vector.broadcast %cst : f32 to vector<16x128xf32>
    %15 = arith.minimumf %13, %14 : vector<16x128xf32>
    %c7 = arith.constant 7 : index
    %c0_14 = arith.constant 0 : index
    %c0_15 = arith.constant 0 : index
    %16 = vector.load %arg1[%c7, %c0_14, %c0_15] : memref<8x16x128xf32, #tpu.memory_space<vmem>>, vector<1x16x128xf32>
    %17 = vector.shape_cast %16 : vector<1x16x128xf32> to vector<16x128xf32>
    %cst_16 = arith.constant 4.13516665 : f32
    %18 = vector.broadcast %cst_16 : f32 to vector<16x128xf32>
    %19 = arith.minimumf %17, %18 : vector<16x128xf32>
    %20 = arith.subf %5, %1 : vector<16x128xf32>
    %cst_17 = arith.constant 1.000000e+00 : f32
    %21 = vector.broadcast %cst_17 : f32 to vector<16x128xf32>
    %22 = arith.addf %20, %21 : vector<16x128xf32>
    %23 = arith.subf %7, %3 : vector<16x128xf32>
    %cst_18 = arith.constant 1.000000e+00 : f32
    %24 = vector.broadcast %cst_18 : f32 to vector<16x128xf32>
    %25 = arith.addf %23, %24 : vector<16x128xf32>
    %cst_19 = arith.constant 5.000000e-01 : f32
    %26 = vector.broadcast %cst_19 : f32 to vector<16x128xf32>
    %27 = arith.mulf %26, %22 : vector<16x128xf32>
    %28 = arith.addf %1, %27 : vector<16x128xf32>
    %cst_20 = arith.constant 5.000000e-01 : f32
    %29 = vector.broadcast %cst_20 : f32 to vector<16x128xf32>
    %30 = arith.mulf %29, %25 : vector<16x128xf32>
    %31 = arith.addf %3, %30 : vector<16x128xf32>
    %32 = arith.mulf %9, %22 : vector<16x128xf32>
    %33 = arith.addf %32, %28 : vector<16x128xf32>
    %34 = arith.mulf %11, %25 : vector<16x128xf32>
    %35 = arith.addf %34, %31 : vector<16x128xf32>
    %36 = math.exp %15 : vector<16x128xf32>
    %37 = arith.mulf %36, %22 : vector<16x128xf32>
    %38 = math.exp %19 : vector<16x128xf32>
    %39 = arith.mulf %38, %25 : vector<16x128xf32>
    %cst_21 = arith.constant 5.000000e-01 : f32
    %40 = vector.broadcast %cst_21 : f32 to vector<16x128xf32>
    %41 = arith.mulf %40, %37 : vector<16x128xf32>
    %42 = arith.subf %33, %41 : vector<16x128xf32>
    %cst_22 = arith.constant 5.000000e-01 : f32
    %43 = vector.broadcast %cst_22 : f32 to vector<16x128xf32>
    %44 = arith.mulf %43, %39 : vector<16x128xf32>
    %45 = arith.subf %35, %44 : vector<16x128xf32>
    %cst_23 = arith.constant 5.000000e-01 : f32
    %46 = vector.broadcast %cst_23 : f32 to vector<16x128xf32>
    %47 = arith.mulf %46, %37 : vector<16x128xf32>
    %48 = arith.addf %33, %47 : vector<16x128xf32>
    %cst_24 = arith.constant 1.000000e+00 : f32
    %49 = vector.broadcast %cst_24 : f32 to vector<16x128xf32>
    %50 = arith.subf %48, %49 : vector<16x128xf32>
    %cst_25 = arith.constant 5.000000e-01 : f32
    %51 = vector.broadcast %cst_25 : f32 to vector<16x128xf32>
    %52 = arith.mulf %51, %39 : vector<16x128xf32>
    %53 = arith.addf %35, %52 : vector<16x128xf32>
    %cst_26 = arith.constant 1.000000e+00 : f32
    %54 = vector.broadcast %cst_26 : f32 to vector<16x128xf32>
    %55 = arith.subf %53, %54 : vector<16x128xf32>
    %cst_27 = arith.constant 2.550000e+02 : f32
    %56 = vector.broadcast %cst_27 : f32 to vector<16x128xf32>
    %57 = arith.minimumf %42, %56 : vector<16x128xf32>
    %cst_28 = arith.constant 0.000000e+00 : f32
    %58 = vector.broadcast %cst_28 : f32 to vector<16x128xf32>
    %59 = arith.maximumf %57, %58 : vector<16x128xf32>
    %cst_29 = arith.constant 2.550000e+02 : f32
    %60 = vector.broadcast %cst_29 : f32 to vector<16x128xf32>
    %61 = arith.minimumf %45, %60 : vector<16x128xf32>
    %cst_30 = arith.constant 0.000000e+00 : f32
    %62 = vector.broadcast %cst_30 : f32 to vector<16x128xf32>
    %63 = arith.maximumf %61, %62 : vector<16x128xf32>
    %cst_31 = arith.constant 2.550000e+02 : f32
    %64 = vector.broadcast %cst_31 : f32 to vector<16x128xf32>
    %65 = arith.minimumf %50, %64 : vector<16x128xf32>
    %cst_32 = arith.constant 0.000000e+00 : f32
    %66 = vector.broadcast %cst_32 : f32 to vector<16x128xf32>
    %67 = arith.maximumf %65, %66 : vector<16x128xf32>
    %cst_33 = arith.constant 2.550000e+02 : f32
    %68 = vector.broadcast %cst_33 : f32 to vector<16x128xf32>
    %69 = arith.minimumf %55, %68 : vector<16x128xf32>
    %cst_34 = arith.constant 0.000000e+00 : f32
    %70 = vector.broadcast %cst_34 : f32 to vector<16x128xf32>
    %71 = arith.maximumf %69, %70 : vector<16x128xf32>
    %72 = arith.subf %67, %59 : vector<16x128xf32>
    %cst_35 = arith.constant 1.000000e+00 : f32
    %73 = vector.broadcast %cst_35 : f32 to vector<16x128xf32>
    %74 = arith.addf %72, %73 : vector<16x128xf32>
    %75 = arith.subf %71, %63 : vector<16x128xf32>
    %cst_36 = arith.constant 1.000000e+00 : f32
    %76 = vector.broadcast %cst_36 : f32 to vector<16x128xf32>
    %77 = arith.addf %75, %76 : vector<16x128xf32>
    %cst_37 = arith.constant 5.000000e-01 : f32
    %78 = vector.broadcast %cst_37 : f32 to vector<16x128xf32>
    %79 = arith.mulf %74, %78 : vector<16x128xf32>
    %80 = arith.addf %59, %79 : vector<16x128xf32>
    %cst_38 = arith.constant 5.000000e-01 : f32
    %81 = vector.broadcast %cst_38 : f32 to vector<16x128xf32>
    %82 = arith.mulf %77, %81 : vector<16x128xf32>
    %83 = arith.addf %63, %82 : vector<16x128xf32>
    %cst_39 = arith.constant 0.000000e+00 : f32
    %84 = vector.broadcast %cst_39 : f32 to vector<16x128xf32>
    %85 = arith.cmpf oge, %74, %84 : vector<16x128xf32>
    %cst_40 = arith.constant 0.000000e+00 : f32
    %86 = vector.broadcast %cst_40 : f32 to vector<16x128xf32>
    %87 = arith.cmpf oge, %77, %86 : vector<16x128xf32>
    %88 = arith.andi %85, %87 : vector<16x128xi1>
    %cst_41 = arith.constant 2.560000e+02 : f32
    %89 = vector.broadcast %cst_41 : f32 to vector<16x128xf32>
    %90 = arith.cmpf olt, %80, %89 : vector<16x128xf32>
    %91 = arith.andi %88, %90 : vector<16x128xi1>
    %cst_42 = arith.constant 2.560000e+02 : f32
    %92 = vector.broadcast %cst_42 : f32 to vector<16x128xf32>
    %93 = arith.cmpf olt, %83, %92 : vector<16x128xf32>
    %94 = arith.andi %91, %93 : vector<16x128xi1>
    %95 = arith.extui %94 : vector<16x128xi1> to vector<16x128xi32>
    %96 = arith.sitofp %95 : vector<16x128xi32> to vector<16x128xf32>
    %c0_43 = arith.constant 0 : index
    %c0_44 = arith.constant 0 : index
    %c0_45 = arith.constant 0 : index
    %97 = vector.load %arg2[%c0_43, %c0_44, %c0_45] : memref<5x16x128xf32, #tpu.memory_space<vmem>>, vector<1x16x128xf32>
    %98 = vector.shape_cast %97 : vector<1x16x128xf32> to vector<16x128xf32>
    %99 = vector.shape_cast %59 : vector<16x128xf32> to vector<1x16x128xf32>
    tpu.vector_store %arg2[%c0_43, %c0_44, %c0_45], %99 {strides = array<i32>} : memref<5x16x128xf32, #tpu.memory_space<vmem>>, vector<1x16x128xf32>,
    %c1_46 = arith.constant 1 : index
    %c0_47 = arith.constant 0 : index
    %c0_48 = arith.constant 0 : index
    %100 = vector.load %arg2[%c1_46, %c0_47, %c0_48] : memref<5x16x128xf32, #tpu.memory_space<vmem>>, vector<1x16x128xf32>
    %101 = vector.shape_cast %100 : vector<1x16x128xf32> to vector<16x128xf32>
    %102 = vector.shape_cast %63 : vector<16x128xf32> to vector<1x16x128xf32>
    tpu.vector_store %arg2[%c1_46, %c0_47, %c0_48], %102 {strides = array<i32>} : memref<5x16x128xf32, #tpu.memory_space<vmem>>, vector<1x16x128xf32>,
    %c2_49 = arith.constant 2 : index
    %c0_50 = arith.constant 0 : index
    %c0_51 = arith.constant 0 : index
    %103 = vector.load %arg2[%c2_49, %c0_50, %c0_51] : memref<5x16x128xf32, #tpu.memory_space<vmem>>, vector<1x16x128xf32>
    %104 = vector.shape_cast %103 : vector<1x16x128xf32> to vector<16x128xf32>
    %105 = vector.shape_cast %67 : vector<16x128xf32> to vector<1x16x128xf32>
    tpu.vector_store %arg2[%c2_49, %c0_50, %c0_51], %105 {strides = array<i32>} : memref<5x16x128xf32, #tpu.memory_space<vmem>>, vector<1x16x128xf32>,
    %c3_52 = arith.constant 3 : index
    %c0_53 = arith.constant 0 : index
    %c0_54 = arith.constant 0 : index
    %106 = vector.load %arg2[%c3_52, %c0_53, %c0_54] : memref<5x16x128xf32, #tpu.memory_space<vmem>>, vector<1x16x128xf32>
    %107 = vector.shape_cast %106 : vector<1x16x128xf32> to vector<16x128xf32>
    %108 = vector.shape_cast %71 : vector<16x128xf32> to vector<1x16x128xf32>
    tpu.vector_store %arg2[%c3_52, %c0_53, %c0_54], %108 {strides = array<i32>} : memref<5x16x128xf32, #tpu.memory_space<vmem>>, vector<1x16x128xf32>,
    %c4_55 = arith.constant 4 : index
    %c0_56 = arith.constant 0 : index
    %c0_57 = arith.constant 0 : index
    %109 = vector.load %arg2[%c4_55, %c0_56, %c0_57] : memref<5x16x128xf32, #tpu.memory_space<vmem>>, vector<1x16x128xf32>
    %110 = vector.shape_cast %109 : vector<1x16x128xf32> to vector<16x128xf32>
    %111 = vector.shape_cast %96 : vector<16x128xf32> to vector<1x16x128xf32>
    tpu.vector_store %arg2[%c4_55, %c0_56, %c0_57], %111 {strides = array<i32>} : memref<5x16x128xf32, #tpu.memory_space<vmem>>, vector<1x16x128xf32>,
    return
  }
  func.func @transform_0(%arg0: i32) -> (i32, i32, i32) {
    %c0_i32 = arith.constant 0 : i32
    %c0_i32_0 = arith.constant 0 : i32
    %c0_i32_1 = arith.constant 0 : i32
    return %c0_i32, %arg0, %c0_i32_0 : i32, i32, i32
  }
  func.func @transform_1(%arg0: i32) -> (i32, i32, i32) {
    %c0_i32 = arith.constant 0 : i32
    %c0_i32_0 = arith.constant 0 : i32
    %c0_i32_1 = arith.constant 0 : i32
    return %c0_i32, %arg0, %c0_i32_0 : i32, i32, i32
  }
}

</mosaic_0001>

<llo_original>
// kernel: _decode_all.1
$region0: #{_decode_all.1}
  #allocation0 [shape = 'u32[]', space=smem, size = 0x4, offset = 0x4, fixed_abs, tag = 'smem constant byte address 0x4 - core index']
  #allocation1 [shape = 'u32[144,128]{1,0:T(1,128)}', space=vmem, size = 0x12000, scoped, tag = 'internal scratch']
  %s0 = inlined_call_operand.vmem [shape: f32[8,32,128], index: 0, kind: input, shape index: {}]
  %s1 = inlined_call_operand.vmem [shape: f32[5,32,128], index: 1, kind: output, shape index: {}]
  %s2 = sld [smem:[#allocation0]]
  $region109: #{_decode_all.1} parent=0
    _
  %s4 = ssub.s32 1, %s2
  %s5 = scalar_select 0, %s4, %s2
  $region1: #{_decode_all.1} parent=0
    #allocation2 [shape = 'u8[131072]{0}', space=vmem, size = 0x20000, scoped, tag = 'input window, operand 0']
    #allocation3 [shape = 'u8[81920]{0}', space=vmem, size = 0x14000, scoped, tag = 'output window, operand 0']
    loop: start=0, step=1, limit=4
    $region2: #{_decode_all.1} parent=1 // loop_pre_header
      _
    $region3: #{_decode_all.1} parent=1 // loop_header
      %s7 = sphi 0, %s11
      %p8 = scmp.ge.s32.totalorder %s7, 4
      %s17 = sphi 0, %s19
      %s20 = sphi 0, %s17
      %s21 = sphi 0, %s20
      %s37 = sphi 0, %s21
      %s43 = sphi 0, %s45
      %s46 = sphi 0, %s43
      %s47 = sphi 0, %s46
      %s63 = sphi 0, %s47
    $region4: #{_decode_all.1} parent=1 // loop_header_branch
      %10 = sbr.rel (%p8) target = $region8
    $region5: #{_decode_all.1} parent=1 // loop_body
      %s12 = ssub.s32 %s7, 1
      %s13 = ssub.s32 %s7, 2
      %s14 = sadd.s32 %s7, 1
      %s15 = ssub.s32 %s7, %s14
      %p16 = scmp.eq.s32.totalorder %s15, 0
      %s18 = sadd.s32 %s17, 1
      %s19 = scalar_select %p16, %s17, %s18
      %p22 = pneg %p16
      %p23 = scmp.eq.s32.totalorder %s7, 1
      %p24 = por %p22, %p23
      %p25 = scmp.ne.s32.totalorder %s17, %s20
      %p26 = scmp.eq.s32.totalorder %s7, 0
      %p27 = por %p25, %p26
      %p28 = scmp.ne.s32.totalorder %s17, %s20
      %p29 = scmp.eq.s32.totalorder %s12, 1
      %p30 = por %p28, %p29
      %p31 = scmp.ne.s32.totalorder %s20, %s21
      %p32 = scmp.eq.s32.totalorder %s12, 0
      %p33 = por %p31, %p32
      %p34 = scmp.ne.s32.totalorder %s20, %s21
      %p35 = scmp.eq.s32.totalorder %s13, 1
      %p36 = por %p34, %p35
      %p38 = scmp.ne.s32.totalorder %s21, %s37
      %p39 = scmp.eq.s32.totalorder %s13, 0
      %p40 = por %p38, %p39
      %s41 = ssub.s32 %s7, %s14
      %p42 = scmp.eq.s32.totalorder %s41, 0
      %s44 = sadd.s32 %s43, 1
      %s45 = scalar_select %p42, %s43, %s44
      %p48 = pneg %p42
      %p49 = scmp.eq.s32.totalorder %s7, 1
      %p50 = por %p48, %p49
      %p51 = scmp.ne.s32.totalorder %s43, %s46
      %p52 = scmp.eq.s32.totalorder %s7, 0
      %p53 = por %p51, %p52
      %p54 = scmp.ne.s32.totalorder %s43, %s46
      %p55 = scmp.eq.s32.totalorder %s12, 1
      %p56 = por %p54, %p55
      %p57 = scmp.ne.s32.totalorder %s46, %s47
      %p58 = scmp.eq.s32.totalorder %s12, 0
      %p59 = por %p57, %p58
      %p60 = scmp.ne.s32.totalorder %s46, %s47
      %p61 = scmp.eq.s32.totalorder %s13, 1
      %p62 = por %p60, %p61
      %p64 = scmp.ne.s32.totalorder %s47, %s63
      %p65 = scmp.eq.s32.totalorder %s13, 0
      %p66 = por %p64, %p65
      %p67 = scmp.le.s32.totalorder 1, %s7
      %p68 = scmp.lt.s32.totalorder %s7, 3
      %p69 = pnand %p67, %p68
      %p70 = pneg %p69
      // Predicated region
      $region9: #{_decode_all.1} parent=5 // pred_check
        _
      $region10: #{_decode_all.1} parent=5 // pred_check_branch
        %72 = sbr.rel (%p69) target = $region12
      $region11: #{_decode_all.1} parent=5 // pred_region
        %s73 = ssub.s32 %s7, 1
      $region12: #{_decode_all.1} parent=5 // pred_fallthru
        _
      %p74 = scmp.lt.s32.totalorder %s7, 2
      // Predicated region
      $region13: #{_decode_all.1} parent=5 // pred_check
        %p75 = pneg %p74
      $region14: #{_decode_all.1} parent=5 // pred_check_branch
        %77 = sbr.rel (%p75) target = $region16
      $region15: #{_decode_all.1} parent=5 // pred_region
        // Predicated region
        $region17: #{_decode_all.1} parent=15 // pred_check
          %p78 = pneg %p27
        $region18: #{_decode_all.1} parent=15 // pred_check_branch
          %80 = sbr.rel (%p78) target = $region20
        $region19: #{_decode_all.1} parent=15 // pred_region
          %s81 = sand.u32 %s17, 1
          %s82 = sand.u32 %s17, 1
          %s83 = smul.addr %s82, 128
          %s84 = scalar_lea.vmem [#allocation2], %s83
          %s85 = smul.u32 2, %s7
          %s86 = smul.addr %s85, 8
          %s87 = scalar_lea.vmem %s0, %s86
          // Predicated region
          $region21: #{_decode_all.1} parent=19 // pred_check
            _
          $region22: #{_decode_all.1} parent=19 // pred_check_branch
            %89 = sbr.rel (0) target = $region24
          $region23: #{_decode_all.1} parent=19 // pred_region
            // Predicated region
            $region25: #{_decode_all.1} parent=23 // pred_check
              _
            $region26: #{_decode_all.1} parent=23 // pred_check_branch
              %91 = sbr.rel (0) target = $region28
            $region27: #{_decode_all.1} parent=23 // pred_region
              // Predicated region
              $region40: #{_decode_all.1} parent=27 // pred_check
                _
              $region41: #{_decode_all.1} parent=27 // pred_check_branch
                %137 = sbr.rel (0) target = $region43
              $region42: #{_decode_all.1} parent=27 // pred_region
                loop: start=0, step=1, limit=1
                $region44: #{_decode_all.1} parent=42 // loop_pre_header
                  _
                $region45: #{_decode_all.1} parent=42 // loop_header
                  %s139 = sphi 0, %s143
                  %p140 = scmp.ge.s32.totalorder %s139, 1
                  %s144 = sphi %s87, %s87
                  %s145 = sphi %s84, %s84
                $region46: #{_decode_all.1} parent=42 // loop_header_branch
                  %142 = sbr.rel (%p140) target = $region50
                $region47: #{_decode_all.1} parent=42 // loop_body
                  %v146 = vld [vmem:[%s144] sm:$0xff]
                  %147 = vst [vmem:[%s145] sm:$0xff] %v146
                  %v148 = vld [vmem:[%s144 + $0x8] sm:$0xff]
                  %149 = vst [vmem:[%s145 + $0x8] sm:$0xff] %v148
                  %v150 = vld [vmem:[%s144 + $0x20] sm:$0xff]
                  %151 = vst [vmem:[%s145 + $0x10] sm:$0xff] %v150
                  %v152 = vld [vmem:[%s144 + $0x28] sm:$0xff]
                  %153 = vst [vmem:[%s145 + $0x18] sm:$0xff] %v152
                  %v154 = vld [vmem:[%s144 + $0x40] sm:$0xff]
                  %155 = vst [vmem:[%s145 + $0x20] sm:$0xff] %v154
                  %v156 = vld [vmem:[%s144 + $0x48] sm:$0xff]
                  %157 = vst [vmem:[%s145 + $0x28] sm:$0xff] %v156
                  %v158 = vld [vmem:[%s144 + $0x60] sm:$0xff]
                  %159 = vst [vmem:[%s145 + $0x30] sm:$0xff] %v158
                  %v160 = vld [vmem:[%s144 + $0x68] sm:$0xff]
                  %161 = vst [vmem:[%s145 + $0x38] sm:$0xff] %v160
                  %v162 = vld [vmem:[%s144 + $0x80] sm:$0xff]
                  %163 = vst [vmem:[%s145 + $0x40] sm:$0xff] %v162
                  %v164 = vld [vmem:[%s144 + $0x88] sm:$0xff]
                  %165 = vst [vmem:[%s145 + $0x48] sm:$0xff] %v164
                  %v166 = vld [vmem:[%s144 + $0xa0] sm:$0xff]
                  %167 = vst [vmem:[%s145 + $0x50] sm:$0xff] %v166
                  %v168 = vld [vmem:[%s144 + $0xa8] sm:$0xff]
                  %169 = vst [vmem:[%s145 + $0x58] sm:$0xff] %v168
                  %v170 = vld [vmem:[%s144 + $0xc0] sm:$0xff]
                  %171 = vst [vmem:[%s145 + $0x60] sm:$0xff] %v170
                  %v172 = vld [vmem:[%s144 + $0xc8] sm:$0xff]
                  %173 = vst [vmem:[%s145 + $0x68] sm:$0xff] %v172
                  %v174 = vld [vmem:[%s144 + $0xe0] sm:$0xff]
                  %175 = vst [vmem:[%s145 + $0x70] sm:$0xff] %v174
                  %v176 = vld [vmem:[%s144 + $0xe8] sm:$0xff]
                  %177 = vst [vmem:[%s145 + $0x78] sm:$0xff] %v176
                $region48: #{_decode_all.1} parent=42 // loop_footer
                  %s143 = sadd.s32 1, %s139
                $region49: #{_decode_all.1} parent=42 // loop_footer_branch
                  %138 = sbr.rel target = $region45
                $region50: #{_decode_all.1} parent=42 // loop_exit
                  _
              $region43: #{_decode_all.1} parent=27 // pred_fallthru
                _
              // Predicated region
              $region51: #{_decode_all.1} parent=27 // pred_check
                _
              $region52: #{_decode_all.1} parent=27 // pred_check_branch
                %179 = sbr.rel target = $region54
              $region53: #{_decode_all.1} parent=27 // pred_region
                _
              $region54: #{_decode_all.1} parent=27 // pred_fallthru
                _
            $region28: #{_decode_all.1} parent=23 // pred_fallthru
              _
            // Predicated region
            $region29: #{_decode_all.1} parent=23 // pred_check
              _
            $region30: #{_decode_all.1} parent=23 // pred_check_branch
              %93 = sbr.rel target = $region32
            $region31: #{_decode_all.1} parent=23 // pred_region
              %s95 = ssub.s32 256, 1
              loop: start=0, step=1, limit=1
              $region33: #{_decode_all.1} parent=31 // loop_pre_header
                _
              $region34: #{_decode_all.1} parent=31 // loop_header
                %s97 = sphi 0, %s101
                %p98 = scmp.ge.s32.totalorder %s97, 1
                %s102 = sphi %s87, %s87
                %s103 = sphi %s84, %s84
              $region35: #{_decode_all.1} parent=31 // loop_header_branch
                %100 = sbr.rel (%p98) target = $region39
              $region36: #{_decode_all.1} parent=31 // loop_body
                %v104 = vld [vmem:[%s102] sm:%s95]
                %105 = vst [vmem:[%s103] sm:%s95] %v104
                %v106 = vld [vmem:[%s102 + $0x8] sm:%s95]
                %107 = vst [vmem:[%s103 + $0x8] sm:%s95] %v106
                %v108 = vld [vmem:[%s102 + $0x20] sm:%s95]
                %109 = vst [vmem:[%s103 + $0x10] sm:%s95] %v108
                %v110 = vld [vmem:[%s102 + $0x28] sm:%s95]
                %111 = vst [vmem:[%s103 + $0x18] sm:%s95] %v110
                %v112 = vld [vmem:[%s102 + $0x40] sm:%s95]
                %113 = vst [vmem:[%s103 + $0x20] sm:%s95] %v112
                %v114 = vld [vmem:[%s102 + $0x48] sm:%s95]
                %115 = vst [vmem:[%s103 + $0x28] sm:%s95] %v114
                %v116 = vld [vmem:[%s102 + $0x60] sm:%s95]
                %117 = vst [vmem:[%s103 + $0x30] sm:%s95] %v116
                %v118 = vld [vmem:[%s102 + $0x68] sm:%s95]
                %119 = vst [vmem:[%s103 + $0x38] sm:%s95] %v118
                %v120 = vld [vmem:[%s102 + $0x80] sm:%s95]
                %121 = vst [vmem:[%s103 + $0x40] sm:%s95] %v120
                %v122 = vld [vmem:[%s102 + $0x88] sm:%s95]
                %123 = vst [vmem:[%s103 + $0x48] sm:%s95] %v122
                %v124 = vld [vmem:[%s102 + $0xa0] sm:%s95]
                %125 = vst [vmem:[%s103 + $0x50] sm:%s95] %v124
                %v126 = vld [vmem:[%s102 + $0xa8] sm:%s95]
                %127 = vst [vmem:[%s103 + $0x58] sm:%s95] %v126
                %v128 = vld [vmem:[%s102 + $0xc0] sm:%s95]
                %129 = vst [vmem:[%s103 + $0x60] sm:%s95] %v128
                %v130 = vld [vmem:[%s102 + $0xc8] sm:%s95]
                %131 = vst [vmem:[%s103 + $0x68] sm:%s95] %v130
                %v132 = vld [vmem:[%s102 + $0xe0] sm:%s95]
                %133 = vst [vmem:[%s103 + $0x70] sm:%s95] %v132
                %v134 = vld [vmem:[%s102 + $0xe8] sm:%s95]
                %135 = vst [vmem:[%s103 + $0x78] sm:%s95] %v134
              $region37: #{_decode_all.1} parent=31 // loop_footer
                %s101 = sadd.s32 1, %s97
              $region38: #{_decode_all.1} parent=31 // loop_footer_branch
                %96 = sbr.rel target = $region34
              $region39: #{_decode_all.1} parent=31 // loop_exit
                _
            $region32: #{_decode_all.1} parent=23 // pred_fallthru
              _
          $region24: #{_decode_all.1} parent=19 // pred_fallthru
            _
          %180 = vnop
        $region20: #{_decode_all.1} parent=15 // pred_fallthru
          _
      $region16: #{_decode_all.1} parent=5 // pred_fallthru
        _
      %p181 = scmp.le.s32.totalorder 1, %s7
      %p182 = scmp.lt.s32.totalorder %s7, 3
      %p183 = pnand %p181, %p182
      %p184 = pneg %p183
      // Predicated region
      $region55: #{_decode_all.1} parent=5 // pred_check
        _
      $region56: #{_decode_all.1} parent=5 // pred_check_branch
        %186 = sbr.rel (%p183) target = $region58
      $region57: #{_decode_all.1} parent=5 // pred_region
        %s187 = ssub.s32 %s7, 1
        %s188 = sand.u32 %s20, 1
        %s189 = sand.u32 %s20, 1
        %s190 = smul.addr %s189, 128
        %s191 = scalar_lea.vmem [#allocation2], %s190
        // Predicated region
        $region59: #{_decode_all.1} parent=57 // pred_check
          %p192 = pneg %p33
        $region60: #{_decode_all.1} parent=57 // pred_check_branch
          %194 = sbr.rel (%p192) target = $region62
        $region61: #{_decode_all.1} parent=57 // pred_region
          _
        $region62: #{_decode_all.1} parent=57 // pred_fallthru
          _
        %s195 = sand.u32 %s20, 1
        %s196 = sand.u32 %s20, 1
        %s197 = smul.addr %s196, 128
        %s198 = scalar_lea.vmem [#allocation2], %s197
        %p199 = pneg %p33
        %p200 = pneg %p30
        %p201 = pneg %p59
        %p202 = pneg %p56
        %s203 = sand.u32 %s46, 1
        %s204 = sand.u32 %s46, 1
        %s205 = smul.addr %s204, 80
        %s206 = scalar_lea.vmem [#allocation3], %s205
        %s207 = smul.u32 2, %s12
        %s208 = smul.u32 2, %s12
        %v209 = vld [vmem:[%s191] sm:$0xff]
        %v210 = vld [vmem:[%s191 + $0x8] sm:$0xff]
        %s211 = scalar_lea.vmem %s191, 16 [#allocation2]
        %v212 = vld [vmem:[%s211] sm:$0xff]
        %v213 = vld [vmem:[%s211 + $0x8] sm:$0xff]
        %s214 = scalar_lea.vmem %s191, 32 [#allocation2]
        %v215 = vld [vmem:[%s214] sm:$0xff]
        %v216 = vld [vmem:[%s214 + $0x8] sm:$0xff]
        %s217 = scalar_lea.vmem %s191, 48 [#allocation2]
        %v218 = vld [vmem:[%s217] sm:$0xff]
        %v219 = vld [vmem:[%s217 + $0x8] sm:$0xff]
        %s220 = scalar_lea.vmem %s191, 64 [#allocation2]
        %v221 = vld [vmem:[%s220] sm:$0xff]
        %v222 = vld [vmem:[%s220 + $0x8] sm:$0xff]
        %s223 = scalar_lea.vmem %s191, 80 [#allocation2]
        %v224 = vld [vmem:[%s223] sm:$0xff]
        %v225 = vld [vmem:[%s223 + $0x8] sm:$0xff]
        %s226 = scalar_lea.vmem %s191, 96 [#allocation2]
        %v227 = vld [vmem:[%s226] sm:$0xff]
        %v228 = vld [vmem:[%s226 + $0x8] sm:$0xff]
        %v229 = vmin.f32 %v227, 4.1351666
        %v230 = vmin.f32 %v228, 4.1351666
        %s231 = scalar_lea.vmem %s191, 112 [#allocation2]
        %v232 = vld [vmem:[%s231] sm:$0xff]
        %v233 = vld [vmem:[%s231 + $0x8] sm:$0xff]
        %v234 = vmin.f32 %v232, 4.1351666
        %v235 = vmin.f32 %v233, 4.1351666
        %v236 = vsub.f32 %v215, %v209
        %v237 = vsub.f32 %v216, %v210
        %v238 = vadd.f32 %v236, 1.0
        %v239 = vadd.f32 %v237, 1.0
        %v240 = vsub.f32 %v218, %v212
        %v241 = vsub.f32 %v219, %v213
        %v242 = vadd.f32 %v240, 1.0
        %v243 = vadd.f32 %v241, 1.0
        %v244 = vmul.f32 %v238, 0.5
        %v245 = vmul.f32 %v239, 0.5
        %v246 = vadd.f32 %v209, %v244
        %v247 = vadd.f32 %v210, %v245
        %v248 = vmul.f32 %v242, 0.5
        %v249 = vmul.f32 %v243, 0.5
        %v250 = vadd.f32 %v212, %v248
        %v251 = vadd.f32 %v213, %v249
        %v252 = vmul.f32 %v221, %v238
        %v253 = vmul.f32 %v222, %v239
        %v254 = vadd.f32 %v252, %v246
        %v255 = vadd.f32 %v253, %v247
        %v256 = vmul.f32 %v224, %v242
        %v257 = vmul.f32 %v225, %v243
        %v258 = vadd.f32 %v256, %v250
        %v259 = vadd.f32 %v257, %v251
        %v260 = vmul.f32 %v229, 1.442695
        %v261 = vpow.pop %v260
        %v262 = vmul.f32 %v230, 1.442695
        %v263 = vpow.pop %v262
        %v264 = vmul.f32 %v261, %v238
        %v265 = vmul.f32 %v263, %v239
        %v266 = vmul.f32 %v234, 1.442695
        %v267 = vpow.pop %v266
        %v268 = vmul.f32 %v235, 1.442695
        %v269 = vpow.pop %v268
        %v270 = vmul.f32 %v267, %v242
        %v271 = vmul.f32 %v269, %v243
        %v272 = vmul.f32 %v264, 0.5
        %v273 = vmul.f32 %v265, 0.5
        %v274 = vsub.f32 %v254, %v272
        %v275 = vsub.f32 %v255, %v273
        %v276 = vmul.f32 %v270, 0.5
        %v277 = vmul.f32 %v271, 0.5
        %v278 = vsub.f32 %v258, %v276
        %v279 = vsub.f32 %v259, %v277
        %v280 = vadd.f32 %v254, %v272
        %v281 = vadd.f32 %v255, %v273
        %v282 = vsub.f32 %v280, 1.0
        %v283 = vsub.f32 %v281, 1.0
        %v284 = vadd.f32 %v258, %v276
        %v285 = vadd.f32 %v259, %v277
        %v286 = vsub.f32 %v284, 1.0
        %v287 = vsub.f32 %v285, 1.0
        %v288 = vmin.f32 %v274, 255.0
        %v289 = vmin.f32 %v275, 255.0
        %v290 = vmax.f32 %v288, 0.0
        %v291 = vmax.f32 %v289, 0.0
        %v292 = vmin.f32 %v278, 255.0
        %v293 = vmin.f32 %v279, 255.0
        %v294 = vmax.f32 %v292, 0.0
        %v295 = vmax.f32 %v293, 0.0
        %v296 = vmin.f32 %v282, 255.0
        %v297 = vmin.f32 %v283, 255.0
        %v298 = vmax.f32 %v296, 0.0
        %v299 = vmax.f32 %v297, 0.0
        %v300 = vmin.f32 %v286, 255.0
        %v301 = vmin.f32 %v287, 255.0
        %v302 = vmax.f32 %v300, 0.0
        %v303 = vmax.f32 %v301, 0.0
        %v304 = vsub.f32 %v298, %v290
        %v305 = vsub.f32 %v299, %v291
        %v306 = vadd.f32 %v304, 1.0
        %v307 = vadd.f32 %v305, 1.0
        %v308 = vsub.f32 %v302, %v294
        %v309 = vsub.f32 %v303, %v295
        %v310 = vadd.f32 %v308, 1.0
        %v311 = vadd.f32 %v309, 1.0
        %v312 = vmul.f32 %v306, 0.5
        %v313 = vmul.f32 %v307, 0.5
        %v314 = vadd.f32 %v290, %v312
        %v315 = vadd.f32 %v291, %v313
        %v316 = vmul.f32 %v310, 0.5
        %v317 = vmul.f32 %v311, 0.5
        %v318 = vadd.f32 %v294, %v316
        %v319 = vadd.f32 %v295, %v317
        %vm320 = vcmp.ge.f32.partialorder %v306, 0.0
        %vm321 = vcmp.ge.f32.partialorder %v307, 0.0
        %vm322 = vcmp.ge.f32.partialorder %v310, 0.0
        %vm323 = vcmp.ge.f32.partialorder %v311, 0.0
        %vm324 = vmand %vm320, %vm322
        %vm325 = vmand %vm321, %vm323
        %vm326 = vcmp.lt.f32.partialorder %v314, 256.0
        %vm327 = vcmp.lt.f32.partialorder %v315, 256.0
        %vm328 = vmand %vm324, %vm326
        %vm329 = vmand %vm325, %vm327
        %vm330 = vcmp.lt.f32.partialorder %v318, 256.0
        %vm331 = vcmp.lt.f32.partialorder %v319, 256.0
        %vm332 = vmand %vm328, %vm330
        %vm333 = vmand %vm329, %vm331
        %v334 = vsel %vm332, 1, 0
        %v335 = vsel %vm333, 1, 0
        %v336 = vcvt.s32.f32 %v334
        %v337 = vcvt.s32.f32 %v335
        %338 = vst [vmem:[%s206] sm:$0xff] %v290
        %339 = vst [vmem:[%s206 + $0x8] sm:$0xff] %v291
        %s340 = scalar_lea.vmem %s206, 16 [#allocation3]
        %341 = vst [vmem:[%s340] sm:$0xff] %v294
        %342 = vst [vmem:[%s340 + $0x8] sm:$0xff] %v295
        %s343 = scalar_lea.vmem %s206, 32 [#allocation3]
        %344 = vst [vmem:[%s343] sm:$0xff] %v298
        %345 = vst [vmem:[%s343 + $0x8] sm:$0xff] %v299
        %s346 = scalar_lea.vmem %s206, 48 [#allocation3]
        %347 = vst [vmem:[%s346] sm:$0xff] %v302
        %348 = vst [vmem:[%s346 + $0x8] sm:$0xff] %v303
        %s349 = scalar_lea.vmem %s206, 64 [#allocation3]
        %350 = vst [vmem:[%s349] sm:$0xff] %v336
        %351 = vst [vmem:[%s349 + $0x8] sm:$0xff] %v337
        %s352 = sand.u32 %s46, 1
        %s353 = sand.u32 %s46, 1
        %s354 = smul.addr %s353, 80
        %s355 = scalar_lea.vmem [#allocation3], %s354
        // Predicated region
        $region63: #{_decode_all.1} parent=57 // pred_check
          %p356 = pneg %p56
        $region64: #{_decode_all.1} parent=57 // pred_check_branch
          %358 = sbr.rel (%p356) target = $region66
        $region65: #{_decode_all.1} parent=57 // pred_region
          %s359 = smul.u32 2, %s12
          %s360 = smul.addr %s359, 8
          %s361 = scalar_lea.vmem %s1, %s360
          // Predicated region
          $region67: #{_decode_all.1} parent=65 // pred_check
            _
          $region68: #{_decode_all.1} parent=65 // pred_check_branch
            %363 = sbr.rel (0) target = $region70
          $region69: #{_decode_all.1} parent=65 // pred_region
            // Predicated region
            $region71: #{_decode_all.1} parent=69 // pred_check
              _
            $region72: #{_decode_all.1} parent=69 // pred_check_branch
              %365 = sbr.rel (0) target = $region74
            $region73: #{_decode_all.1} parent=69 // pred_region
              // Predicated region
              $region86: #{_decode_all.1} parent=73 // pred_check
                _
              $region87: #{_decode_all.1} parent=73 // pred_check_branch
                %399 = sbr.rel (0) target = $region89
              $region88: #{_decode_all.1} parent=73 // pred_region
                loop: start=0, step=1, limit=1
                $region90: #{_decode_all.1} parent=88 // loop_pre_header
                  _
                $region91: #{_decode_all.1} parent=88 // loop_header
                  %s401 = sphi 0, %s405
                  %p402 = scmp.ge.s32.totalorder %s401, 1
                  %s406 = sphi %s355, %s355
                  %s407 = sphi %s361, %s361
                $region92: #{_decode_all.1} parent=88 // loop_header_branch
                  %404 = sbr.rel (%p402) target = $region96
                $region93: #{_decode_all.1} parent=88 // loop_body
                  %v408 = vld [vmem:[%s406] sm:$0xff]
                  %409 = vst [vmem:[%s407] sm:$0xff] %v408
                  %v410 = vld [vmem:[%s406 + $0x8] sm:$0xff]
                  %411 = vst [vmem:[%s407 + $0x8] sm:$0xff] %v410
                  %v412 = vld [vmem:[%s406 + $0x10] sm:$0xff]
                  %413 = vst [vmem:[%s407 + $0x20] sm:$0xff] %v412
                  %v414 = vld [vmem:[%s406 + $0x18] sm:$0xff]
                  %415 = vst [vmem:[%s407 + $0x28] sm:$0xff] %v414
                  %v416 = vld [vmem:[%s406 + $0x20] sm:$0xff]
                  %417 = vst [vmem:[%s407 + $0x40] sm:$0xff] %v416
                  %v418 = vld [vmem:[%s406 + $0x28] sm:$0xff]
                  %419 = vst [vmem:[%s407 + $0x48] sm:$0xff] %v418
                  %v420 = vld [vmem:[%s406 + $0x30] sm:$0xff]
                  %421 = vst [vmem:[%s407 + $0x60] sm:$0xff] %v420
                  %v422 = vld [vmem:[%s406 + $0x38] sm:$0xff]
                  %423 = vst [vmem:[%s407 + $0x68] sm:$0xff] %v422
                  %v424 = vld [vmem:[%s406 + $0x40] sm:$0xff]
                  %425 = vst [vmem:[%s407 + $0x80] sm:$0xff] %v424
                  %v426 = vld [vmem:[%s406 + $0x48] sm:$0xff]
                  %427 = vst [vmem:[%s407 + $0x88] sm:$0xff] %v426
                $region94: #{_decode_all.1} parent=88 // loop_footer
                  %s405 = sadd.s32 1, %s401
                $region95: #{_decode_all.1} parent=88 // loop_footer_branch
                  %400 = sbr.rel target = $region91
                $region96: #{_decode_all.1} parent=88 // loop_exit
                  _
              $region89: #{_decode_all.1} parent=73 // pred_fallthru
                _
              // Predicated region
              $region97: #{_decode_all.1} parent=73 // pred_check
                _
              $region98: #{_decode_all.1} parent=73 // pred_check_branch
                %429 = sbr.rel target = $region100
              $region99: #{_decode_all.1} parent=73 // pred_region
                _
              $region100: #{_decode_all.1} parent=73 // pred_fallthru
                _
            $region74: #{_decode_all.1} parent=69 // pred_fallthru
              _
            // Predicated region
            $region75: #{_decode_all.1} parent=69 // pred_check
              _
            $region76: #{_decode_all.1} parent=69 // pred_check_branch
              %367 = sbr.rel target = $region78
            $region77: #{_decode_all.1} parent=69 // pred_region
              %s369 = ssub.s32 256, 1
              loop: start=0, step=1, limit=1
              $region79: #{_decode_all.1} parent=77 // loop_pre_header
                _
              $region80: #{_decode_all.1} parent=77 // loop_header
                %s371 = sphi 0, %s375
                %p372 = scmp.ge.s32.totalorder %s371, 1
                %s376 = sphi %s355, %s355
                %s377 = sphi %s361, %s361
              $region81: #{_decode_all.1} parent=77 // loop_header_branch
                %374 = sbr.rel (%p372) target = $region85
              $region82: #{_decode_all.1} parent=77 // loop_body
                %v378 = vld [vmem:[%s376] sm:%s369]
                %379 = vst [vmem:[%s377] sm:%s369] %v378
                %v380 = vld [vmem:[%s376 + $0x8] sm:%s369]
                %381 = vst [vmem:[%s377 + $0x8] sm:%s369] %v380
                %v382 = vld [vmem:[%s376 + $0x10] sm:%s369]
                %383 = vst [vmem:[%s377 + $0x20] sm:%s369] %v382
                %v384 = vld [vmem:[%s376 + $0x18] sm:%s369]
                %385 = vst [vmem:[%s377 + $0x28] sm:%s369] %v384
                %v386 = vld [vmem:[%s376 + $0x20] sm:%s369]
                %387 = vst [vmem:[%s377 + $0x40] sm:%s369] %v386
                %v388 = vld [vmem:[%s376 + $0x28] sm:%s369]
                %389 = vst [vmem:[%s377 + $0x48] sm:%s369] %v388
                %v390 = vld [vmem:[%s376 + $0x30] sm:%s369]
                %391 = vst [vmem:[%s377 + $0x60] sm:%s369] %v390
                %v392 = vld [vmem:[%s376 + $0x38] sm:%s369]
                %393 = vst [vmem:[%s377 + $0x68] sm:%s369] %v392
                %v394 = vld [vmem:[%s376 + $0x40] sm:%s369]
                %395 = vst [vmem:[%s377 + $0x80] sm:%s369] %v394
                %v396 = vld [vmem:[%s376 + $0x48] sm:%s369]
                %397 = vst [vmem:[%s377 + $0x88] sm:%s369] %v396
              $region83: #{_decode_all.1} parent=77 // loop_footer
                %s375 = sadd.s32 1, %s371
              $region84: #{_decode_all.1} parent=77 // loop_footer_branch
                %370 = sbr.rel target = $region80
              $region85: #{_decode_all.1} parent=77 // loop_exit
                _
            $region78: #{_decode_all.1} parent=69 // pred_fallthru
              _
          $region70: #{_decode_all.1} parent=65 // pred_fallthru
            _
          %430 = vnop
        $region66: #{_decode_all.1} parent=57 // pred_fallthru
          _
      $region58: #{_decode_all.1} parent=5 // pred_fallthru
        _
      %p431 = scmp.le.s32.totalorder 2, %s7
      // Predicated region
      $region101: #{_decode_all.1} parent=5 // pred_check
        %p432 = pneg %p431
      $region102: #{_decode_all.1} parent=5 // pred_check_branch
        %434 = sbr.rel (%p432) target = $region104
      $region103: #{_decode_all.1} parent=5 // pred_region
        %s435 = ssub.s32 %s7, 2
        // Predicated region
        $region105: #{_decode_all.1} parent=103 // pred_check
          %p436 = pneg %p62
        $region106: #{_decode_all.1} parent=103 // pred_check_branch
          %438 = sbr.rel (%p436) target = $region108
        $region107: #{_decode_all.1} parent=103 // pred_region
          %s439 = sand.u32 %s47, 1
          %s440 = sand.u32 %s47, 1
          %s441 = smul.addr %s440, 80
          %s442 = scalar_lea.vmem [#allocation3], %s441
        $region108: #{_decode_all.1} parent=103 // pred_fallthru
          _
      $region104: #{_decode_all.1} parent=5 // pred_fallthru
        _
    $region6: #{_decode_all.1} parent=1 // loop_footer
      %s11 = sadd.s32 1, %s7
    $region7: #{_decode_all.1} parent=1 // loop_footer_branch
      %6 = sbr.rel target = $region3
    $region8: #{_decode_all.1} parent=1 // loop_exit
      _

</llo_original>
